<compile_context>
chip_gen: v6e
topology: v6e:2x2x1
jax: 0.10.0
libtpu: 0.0.40
codegen_flags: <defaults>
</compile_context>

<pallas_src>
import jax
import jax.numpy as jnp
from jax import lax
from jax.experimental import pallas as pl
from jax.experimental.pallas import tpu as pltpu

block_size = 16   # T
n_embd = 16       # C
head_size = 8     # H

assert block_size & (block_size - 1) == 0, "mask construction assumes power-of-two T"
_LOG2_T = block_size.bit_length() - 1


def head_kernel(x_ref, wqkv_ref, o_ref):
    # x_ref: (B*T, C) in VMEM; wqkv_ref: (C, 3H); o_ref: (B*T, H)
    BT = x_ref.shape[0]
    H = o_ref.shape[-1]
    T = block_size

    x = x_ref[...]            # (B*T, C)
    w_qkv = wqkv_ref[...]     # (C, 3H) — query columns already scaled by 1/sqrt(H)

    # One fused QKV projection for the whole batch.
    qkv = jnp.dot(x, w_qkv, preferred_element_type=jnp.float32)   # (B*T, 3H)
    q = qkv[:, 0:H]
    k = qkv[:, H:2 * H]
    v = qkv[:, 2 * H:3 * H]

    # One score matmul for the whole slab: q @ k^T without materializing a
    # transpose (contract the H axis directly).
    wei = lax.dot_general(
        q, k,
        dimension_numbers=(((1,), (1,)), ((), ())),
        preferred_element_type=jnp.float32)                       # (B*T, B*T)

    # Block-diagonal causal mask (same batch AND key position <= query position).
    # T is a power of two -> shifts/ands instead of vector integer div/mod.
    row = lax.broadcasted_iota(jnp.int32, (BT, BT), 0)
    col = lax.broadcasted_iota(jnp.int32, (BT, BT), 1)
    same_block = jnp.right_shift(row, _LOG2_T) == jnp.right_shift(col, _LOG2_T)
    causal = jnp.bitwise_and(col, T - 1) <= jnp.bitwise_and(row, T - 1)
    mask = jnp.logical_and(same_block, causal)

    wei = jnp.where(mask, wei, jnp.float32(-1e30))

    # Numerically-stable softmax along the last axis; the diagonal is never masked,
    # so every row has at least one finite entry.
    wei = wei - jnp.max(wei, axis=-1, keepdims=True)
    p = jnp.exp(wei)
    p = p * pl.reciprocal(jnp.sum(p, axis=-1, keepdims=True), approx=True)

    # One PV matmul and one full-ref store.
    out = jnp.dot(p, v, preferred_element_type=jnp.float32)       # (B*T, H)
    o_ref[...] = out.astype(o_ref.dtype)


def make_head_weights(w_key, w_query, w_value):
    """Precompute the fused (C, 3H) QKV weight ONCE (hoisted out of the hot path).

    w_*: (H, C) float32 (PyTorch nn.Linear layout). The 1/sqrt(H) attention scale
    is folded into the query columns.
    """
    H = w_key.shape[0]
    scale = jnp.float32(H) ** -0.5
    return jnp.concatenate([w_query.T * scale, w_key.T, w_value.T], axis=1)


@jax.jit
def head_forward(x, w_qkv):
    """x: (B, T, C) float32. w_qkv: (C, 3H) from make_head_weights()."""
    B, T, C = x.shape
    H = w_qkv.shape[1] // 3

    x2d = x.reshape(B * T, C)

    out2d = pl.pallas_call(
        head_kernel,
        out_shape=jax.ShapeDtypeStruct((B * T, H), x.dtype),
        # Full-array VMEM residency on purpose: nothing to pipeline at ~5 KB.
        in_specs=[
            pl.BlockSpec(memory_space=pltpu.MemorySpace.VMEM),
            pl.BlockSpec(memory_space=pltpu.MemorySpace.VMEM),
        ],
        out_specs=pl.BlockSpec(memory_space=pltpu.MemorySpace.VMEM),
    )(x2d, w_qkv)

    return out2d.reshape(B, T, H)


def head_reference(x, w_key, w_query, w_value):
    """Pure-JAX reference matching the PyTorch forward (eval mode)."""
    k = x @ w_key.T
    q = x @ w_query.T
    v = x @ w_value.T
    wei = (q @ jnp.swapaxes(k, -2, -1)) * (k.shape[-1] ** -0.5)
    T = x.shape[1]
    tril = jnp.tril(jnp.ones((T, T), dtype=bool))
    wei = jnp.where(tril, wei, -jnp.inf)
    wei = jax.nn.softmax(wei, axis=-1)
    return wei @ v


if __name__ == "__main__":
    key = jax.random.PRNGKey(0)
    kx, kk, kq, kv = jax.random.split(key, 4)

    B, T, C, H = 2, block_size, n_embd, head_size

    x = jax.random.normal(kx, (B, T, C), dtype=jnp.float32)
    # Deterministic params (shapes match nn.Linear(n_embd, head_size, bias=False)).
    w_key = jax.random.normal(kk, (H, C), dtype=jnp.float32) * (C ** -0.5)
    w_query = jax.random.normal(kq, (H, C), dtype=jnp.float32) * (C ** -0.5)
    w_value = jax.random.normal(kv, (H, C), dtype=jnp.float32) * (C ** -0.5)

    # Weight prep happens once (init-time), not per forward call.
    w_qkv = jax.block_until_ready(make_head_weights(w_key, w_query, w_value))

    out = head_forward(x, w_qkv)
    out = jax.block_until_ready(out)

    ref = head_reference(x, w_key, w_query, w_value)
    assert out.shape == (B, T, H)
    # Tolerance loosened for the EUP approx reciprocal in the softmax denominator.
    assert jnp.allclose(out, ref, atol=2e-3, rtol=2e-3), "mismatch vs reference"

    print("KERNEL_OK")
</pallas_src>

<mosaic_0001>
module attributes {stable_mosaic.version = 11 : i64} {
  func.func @head_kernel(%arg0: memref<32x16xf32, #tpu.memory_space<vmem>>, %arg1: memref<16x24xf32, #tpu.memory_space<vmem>>, %arg2: memref<32x8xf32, #tpu.memory_space<vmem>>) attributes {dimension_semantics = [], scalar_prefetch = 0 : i64, scratch_operands = 0 : i64, tpu.core_type = #tpu.core_type<tc>} {
    %c0 = arith.constant 0 : index
    %c0_0 = arith.constant 0 : index
    %0 = vector.load %arg0[%c0, %c0_0] : memref<32x16xf32, #tpu.memory_space<vmem>>, vector<32x16xf32>
    %c0_1 = arith.constant 0 : index
    %c0_2 = arith.constant 0 : index
    %1 = vector.load %arg1[%c0_1, %c0_2] : memref<16x24xf32, #tpu.memory_space<vmem>>, vector<16x24xf32>
    %cst = arith.constant dense<0.000000e+00> : vector<32x24xf32>
    %2 = tpu.matmul %0, %1, %cst {dimension_numbers = #tpu.dot_dimension_numbers<[1], [0], [0], [1], [0, 0, 1, 1], [], []>} : vector<32x16xf32>, vector<16x24xf32>, vector<32x24xf32> -> vector<32x24xf32>
    %3 = vector.extract_strided_slice %2 {offsets = [0, 0], sizes = [32, 8], strides = [1, 1]} : vector<32x24xf32> to vector<32x8xf32>
    %4 = vector.extract_strided_slice %2 {offsets = [0, 8], sizes = [32, 8], strides = [1, 1]} : vector<32x24xf32> to vector<32x8xf32>
    %5 = vector.extract_strided_slice %2 {offsets = [0, 16], sizes = [32, 8], strides = [1, 1]} : vector<32x24xf32> to vector<32x8xf32>
    %cst_3 = arith.constant dense<0.000000e+00> : vector<32x32xf32>
    %6 = tpu.matmul %3, %4, %cst_3 {dimension_numbers = #tpu.dot_dimension_numbers<[1], [1], [0], [0], [0, 0, 1, 0], [], []>} : vector<32x8xf32>, vector<32x8xf32>, vector<32x32xf32> -> vector<32x32xf32>
    %7 = tpu.iota {dimensions = array<i32: 0>} : vector<32x32xi32>
    %8 = tpu.iota {dimensions = array<i32: 1>} : vector<32x32xi32>
    %c4_i32 = arith.constant 4 : i32
    %9 = vector.broadcast %c4_i32 : i32 to vector<32x32xi32>
    %10 = arith.shrsi %7, %9 : vector<32x32xi32>
    %c4_i32_4 = arith.constant 4 : i32
    %11 = vector.broadcast %c4_i32_4 : i32 to vector<32x32xi32>
    %12 = arith.shrsi %8, %11 : vector<32x32xi32>
    %13 = arith.cmpi eq, %10, %12 : vector<32x32xi32>
    %c15_i32 = arith.constant 15 : i32
    %14 = vector.broadcast %c15_i32 : i32 to vector<32x32xi32>
    %15 = arith.andi %8, %14 : vector<32x32xi32>
    %c15_i32_5 = arith.constant 15 : i32
    %16 = vector.broadcast %c15_i32_5 : i32 to vector<32x32xi32>
    %17 = arith.andi %7, %16 : vector<32x32xi32>
    %18 = arith.cmpi sle, %15, %17 : vector<32x32xi32>
    %19 = arith.andi %13, %18 : vector<32x32xi1>
    %cst_6 = arith.constant -1.000000e+30 : f32
    %20 = vector.broadcast %cst_6 : f32 to vector<32x32xf32>
    %21 = arith.select %19, %6, %20 : vector<32x32xi1>, vector<32x32xf32>
    %cst_7 = arith.constant dense<0xFF800000> : vector<32xf32>
    %22 = vector.multi_reduction <maximumf>, %21, %cst_7 [1] : vector<32x32xf32> to vector<32xf32>
    %23 = vector.shape_cast %22 : vector<32xf32> to vector<32x1xf32>
    %24 = vector.broadcast %23 : vector<32x1xf32> to vector<32x32xf32>
    %25 = arith.subf %21, %24 : vector<32x32xf32>
    %26 = math.exp %25 : vector<32x32xf32>
    %cst_8 = arith.constant dense<0.000000e+00> : vector<32xf32>
    %27 = vector.multi_reduction <add>, %26, %cst_8 [1] : vector<32x32xf32> to vector<32xf32>
    %28 = vector.shape_cast %27 : vector<32xf32> to vector<32x1xf32>
    %29 = tpu.reciprocal %28 {approx = true} : vector<32x1xf32> -> vector<32x1xf32>
    %30 = vector.broadcast %29 : vector<32x1xf32> to vector<32x32xf32>
    %31 = arith.mulf %26, %30 : vector<32x32xf32>
    %cst_9 = arith.constant dense<0.000000e+00> : vector<32x8xf32>
    %32 = tpu.matmul %31, %5, %cst_9 {dimension_numbers = #tpu.dot_dimension_numbers<[1], [0], [0], [1], [0, 0, 1, 1], [], []>} : vector<32x32xf32>, vector<32x8xf32>, vector<32x8xf32> -> vector<32x8xf32>
    %c0_10 = arith.constant 0 : index
    %c0_11 = arith.constant 0 : index
    %33 = vector.load %arg2[%c0_10, %c0_11] : memref<32x8xf32, #tpu.memory_space<vmem>>, vector<32x8xf32>
    tpu.vector_store %arg2[%c0_10, %c0_11], %32 {strides = array<i32>} : memref<32x8xf32, #tpu.memory_space<vmem>>, vector<32x8xf32>,
    return
  }
}

</mosaic_0001>

<llo_original>
// kernel: head_forward.1
$region0: #{head_forward.1}
  #allocation0 [shape = 'u32[]', space=smem, size = 0x4, offset = 0x4, fixed_abs, tag = 'smem constant byte address 0x4 - core index']
  #allocation1 [shape = 'u32[144,128]{1,0:T(1,128)}', space=vmem, size = 0x12000, scoped, tag = 'internal scratch']
  %s0 = inlined_call_operand.hbm [shape: f32[32,16], index: 0, kind: input, shape index: {}]
  %s1 = inlined_call_operand.hbm [shape: f32[16,24], index: 1, kind: input, shape index: {}]
  %s2 = inlined_call_operand.vmem [shape: f32[32,8], index: 2, kind: output, shape index: {}]
  %s3 = sld [smem:[#allocation0]]
  $region26: #{head_forward.1} parent=0
    _
  %s5 = ssub.s32 1, %s3
  %s6 = scalar_select 0, %s5, %s3
  $region1: #{head_forward.1} parent=0
    #allocation2 [shape = 'u8[16384]{0}', space=vmem, size = 0x4000, scoped, tag = 'input window, operand 0, single buffered']
    #allocation3 [shape = 's32[1]{0}', space=sflag, size = 0x4, scoped, tag = 'scoped memory for head_forward.1']
    #allocation4 [shape = 'u8[8192]{0}', space=vmem, size = 0x2000, scoped, tag = 'input window, operand 1, single buffered']
    #allocation5 [shape = 's32[1]{0}', space=sflag, size = 0x4, scoped, tag = 'scoped memory for head_forward.1']
    %7 = vsyncpa [#allocation3], 0
    %8 = vsyncpa [#allocation5], 0
    // Predicated region
    $region2: #{head_forward.1} parent=1 // pred_check
      _
    $region3: #{head_forward.1} parent=1 // pred_check_branch
      %10 = sbr.rel (0) target = $region5
    $region4: #{head_forward.1} parent=1 // pred_region
      %s12 = ssub.s32 512, 512
      %13 = vsyncadd [#allocation3], %s12
      %s14 = sshll.u32 [#allocation2], 4
      %s15 = int_to_ptr.vmem [resolvable:$true] %s14
      %20 = dma.hbm_to_vmem [thread:$0]  %s0, 512, %s15, [#allocation3], 128, 128, 8
    $region5: #{head_forward.1} parent=1 // pred_fallthru
      _
    // Predicated region
    $region6: #{head_forward.1} parent=1 // pred_check
      _
    $region7: #{head_forward.1} parent=1 // pred_check_branch
      %22 = sbr.rel (0) target = $region9
    $region8: #{head_forward.1} parent=1 // pred_region
      %s24 = ssub.s32 256, 256
      %25 = vsyncadd [#allocation5], %s24
      %s26 = sshll.u32 [#allocation4], 4
      %s27 = int_to_ptr.vmem [resolvable:$true] %s26
      %32 = dma.hbm_to_vmem [thread:$0]  %s1, 256, %s27, [#allocation5], 128, 128, 8
    $region9: #{head_forward.1} parent=1 // pred_fallthru
      _
    // Predicated region
    $region10: #{head_forward.1} parent=1 // pred_check
      _
    $region11: #{head_forward.1} parent=1 // pred_check_branch
      %34 = sbr.rel (0) target = $region13
    $region12: #{head_forward.1} parent=1 // pred_region
      %35 = dma.done [#allocation3], 512
    $region13: #{head_forward.1} parent=1 // pred_fallthru
      _
    // Predicated region
    $region14: #{head_forward.1} parent=1 // pred_check
      _
    $region15: #{head_forward.1} parent=1 // pred_check_branch
      %37 = sbr.rel (0) target = $region17
    $region16: #{head_forward.1} parent=1 // pred_region
      %38 = dma.done [#allocation5], 256
    $region17: #{head_forward.1} parent=1 // pred_fallthru
      _
    %v39 = vld [vmem:[#allocation2] sm:$0xff]
    %v40 = vld [vmem:[#allocation2 + $0x8] sm:$0xff]
    %v41 = vld [vmem:[#allocation2 + $0x10] sm:$0xff]
    %v42 = vld [vmem:[#allocation2 + $0x18] sm:$0xff]
    %v43 = vld [vmem:[#allocation4] sm:$0xff]
    %v44 = vld [vmem:[#allocation4 + $0x8] sm:$0xff]
    %vm45 = vcmask 130048
    %v47 = vsel %vm45, %v39, 0
    %v50 = vsel %vm45, %v40, 0
    %v53 = vsel %vm45, %v41, 0
    %v56 = vsel %vm45, %v42, 0
    %58 = vmatprep.subr.mxu0 0.0
    %59 = vmatpush1.msra.mxu0 0.0
    %60 = vmatprep.subr.mxu0 0.0
    %61 = vmatpush1.msra.mxu0 0.0
    %62 = vmatprep.subr.mxu0 0.0
    %63 = vmatpush1.msra.mxu0 0.0
    %64 = vmatprep.subr.mxu0 0.0
    %65 = vmatpush1.msra.mxu0 0.0
    %66 = vmatprep.subr.mxu0 0.0
    %67 = vmatpush1.msra.mxu0 0.0
    %68 = vmatprep.subr.mxu0 0.0
    %69 = vmatpush1.msra.mxu0 0.0
    %70 = vmatprep.subr.mxu0 0.0
    %71 = vmatpush1.msra.mxu0 0.0
    %72 = vmatprep.subr.mxu0 0.0
    %73 = vmatpush1.msra.mxu0 0.0
    %74 = vmatprep.subr.mxu0 0.0
    %75 = vmatpush1.msra.mxu0 0.0
    %76 = vmatprep.subr.mxu0 0.0
    %77 = vmatpush1.msra.mxu0 0.0
    %78 = vmatprep.subr.mxu0 0.0
    %79 = vmatpush1.msra.mxu0 0.0
    %80 = vmatprep.subr.mxu0 0.0
    %81 = vmatpush1.msra.mxu0 0.0
    %82 = vmatprep.subr.mxu0 0.0
    %83 = vmatpush1.msra.mxu0 0.0
    %84 = vmatprep.subr.mxu0 0.0
    %85 = vmatpush1.msra.mxu0 0.0
    %86 = vmatprep.subr.mxu0 0.0
    %87 = vmatpush1.msra.mxu0 %v44
    %88 = vmatprep.subr.mxu0 0.0
    %89 = vmatpush1.msra.mxu0 %v43
    %90 = vmatprep.subr.mxu0 0.0
    %91 = vmatpush2.msra.mxu0 0.0
    %92 = vmatprep.subr.mxu0 0.0
    %93 = vmatpush2.msra.mxu0 0.0
    %94 = vmatprep.subr.mxu0 0.0
    %95 = vmatpush2.msra.mxu0 0.0
    %96 = vmatprep.subr.mxu0 0.0
    %97 = vmatpush2.msra.mxu0 0.0
    %98 = vmatprep.subr.mxu0 0.0
    %99 = vmatpush2.msra.mxu0 0.0
    %100 = vmatprep.subr.mxu0 0.0
    %101 = vmatpush2.msra.mxu0 0.0
    %102 = vmatprep.subr.mxu0 0.0
    %103 = vmatpush2.msra.mxu0 0.0
    %104 = vmatprep.subr.mxu0 0.0
    %105 = vmatpush2.msra.mxu0 0.0
    %106 = vmatprep.subr.mxu0 0.0
    %107 = vmatpush2.msra.mxu0 0.0
    %108 = vmatprep.subr.mxu0 0.0
    %109 = vmatpush2.msra.mxu0 0.0
    %110 = vmatprep.subr.mxu0 0.0
    %111 = vmatpush2.msra.mxu0 0.0
    %112 = vmatprep.subr.mxu0 0.0
    %113 = vmatpush2.msra.mxu0 0.0
    %114 = vmatprep.subr.mxu0 0.0
    %115 = vmatpush2.msra.mxu0 0.0
    %116 = vmatprep.subr.mxu0 0.0
    %117 = vmatpush2.msra.mxu0 0.0
    %118 = vmatprep.subr.mxu0 0.0
    %119 = vmatpush2.msra.mxu0 0.0
    %120 = vmatprep.subr.mxu0 0.0
    %121 = vmatpush2.msra.mxu0 0.0
    %122 = vmatprep.mubr.f32.mxu0 0.0
    %123 = vmatmul.mubr.f32.gmra.mxu0 %v47
    %v124 = vpop.f32.mrf.mxu0
    %v125 = vadd.f32 0.0, %v124
    %v126 = vpop.f32.mrf.mxu0
    %127 = vmatprep.mubr.f32.mxu0 0.0
    %128 = vmatmul.mubr.f32.gmra.mxu0 %v50
    %v129 = vpop.f32.mrf.mxu0
    %v130 = vadd.f32 0.0, %v129
    %v131 = vpop.f32.mrf.mxu0
    %132 = vmatprep.mubr.f32.mxu0 0.0
    %133 = vmatmul.mubr.f32.gmra.mxu0 %v53
    %v134 = vpop.f32.mrf.mxu0
    %v135 = vadd.f32 0.0, %v134
    %v136 = vpop.f32.mrf.mxu0
    %137 = vmatprep.mubr.f32.mxu0 0.0
    %138 = vmatmul.mubr.f32.gmra.mxu0 %v56
    %v139 = vpop.f32.mrf.mxu0
    %v140 = vadd.f32 0.0, %v139
    %v141 = vpop.f32.mrf.mxu0
    %142 = vdwg.mxu0
    %147 = vrot.lane.b32.xlu0 %v125, 120
    %v148 = vpop.permute.xlu0 %147
    %149 = vrot.lane.b32.xlu0 %v130, 120
    %v150 = vpop.permute.xlu0 %149
    %151 = vrot.lane.b32.xlu0 %v135, 120
    %v152 = vpop.permute.xlu0 %151
    %153 = vrot.lane.b32.xlu0 %v140, 120
    %v154 = vpop.permute.xlu0 %153
    %vm155 = vcmask 64512
    %v156 = vsel %vm155, %v125, 0
    %v158 = vsel %vm155, %v130, 0
    %v160 = vsel %vm155, %v135, 0
    %v162 = vsel %vm155, %v140, 0
    %v164 = vsel %vm155, %v148, 0
    %v166 = vsel %vm155, %v150, 0
    %v168 = vsel %vm155, %v152, 0
    %v170 = vsel %vm155, %v154, 0
    %172 = vmatprep.subr.mxu0 0.0
    %173 = vmatpush1.xpose.msra.mxu0 0.0
    %174 = vmatprep.subr.mxu0 0.0
    %175 = vmatpush1.xpose.msra.mxu0 0.0
    %176 = vmatprep.subr.mxu0 0.0
    %177 = vmatpush1.xpose.msra.mxu0 0.0
    %178 = vmatprep.subr.mxu0 0.0
    %179 = vmatpush1.xpose.msra.mxu0 0.0
    %180 = vmatprep.subr.mxu0 0.0
    %181 = vmatpush1.xpose.msra.mxu0 0.0
    %182 = vmatprep.subr.mxu0 0.0
    %183 = vmatpush1.xpose.msra.mxu0 0.0
    %184 = vmatprep.subr.mxu0 0.0
    %185 = vmatpush1.xpose.msra.mxu0 0.0
    %186 = vmatprep.subr.mxu0 0.0
    %187 = vmatpush1.xpose.msra.mxu0 0.0
    %188 = vmatprep.subr.mxu0 0.0
    %189 = vmatpush1.xpose.msra.mxu0 0.0
    %190 = vmatprep.subr.mxu0 0.0
    %191 = vmatpush1.xpose.msra.mxu0 0.0
    %192 = vmatprep.subr.mxu0 0.0
    %193 = vmatpush1.xpose.msra.mxu0 0.0
    %194 = vmatprep.subr.mxu0 0.0
    %195 = vmatpush1.xpose.msra.mxu0 0.0
    %196 = vmatprep.subr.mxu0 0.0
    %197 = vmatpush1.xpose.msra.mxu0 %v170
    %198 = vmatprep.subr.mxu0 0.0
    %199 = vmatpush1.xpose.msra.mxu0 %v168
    %200 = vmatprep.subr.mxu0 0.0
    %201 = vmatpush1.xpose.msra.mxu0 %v166
    %202 = vmatprep.subr.mxu0 0.0
    %203 = vmatpush1.xpose.msra.mxu0 %v164
    %204 = vmatprep.subr.mxu0 0.0
    %205 = vmatpush2.xpose.msra.mxu0 0.0
    %206 = vmatprep.subr.mxu0 0.0
    %207 = vmatpush2.xpose.msra.mxu0 0.0
    %208 = vmatprep.subr.mxu0 0.0
    %209 = vmatpush2.xpose.msra.mxu0 0.0
    %210 = vmatprep.subr.mxu0 0.0
    %211 = vmatpush2.xpose.msra.mxu0 0.0
    %212 = vmatprep.subr.mxu0 0.0
    %213 = vmatpush2.xpose.msra.mxu0 0.0
    %214 = vmatprep.subr.mxu0 0.0
    %215 = vmatpush2.xpose.msra.mxu0 0.0
    %216 = vmatprep.subr.mxu0 0.0
    %217 = vmatpush2.xpose.msra.mxu0 0.0
    %218 = vmatprep.subr.mxu0 0.0
    %219 = vmatpush2.xpose.msra.mxu0 0.0
    %220 = vmatprep.subr.mxu0 0.0
    %221 = vmatpush2.xpose.msra.mxu0 0.0
    %222 = vmatprep.subr.mxu0 0.0
    %223 = vmatpush2.xpose.msra.mxu0 0.0
    %224 = vmatprep.subr.mxu0 0.0
    %225 = vmatpush2.xpose.msra.mxu0 0.0
    %226 = vmatprep.subr.mxu0 0.0
    %227 = vmatpush2.xpose.msra.mxu0 0.0
    %228 = vmatprep.subr.mxu0 0.0
    %229 = vmatpush2.xpose.msra.mxu0 0.0
    %230 = vmatprep.subr.mxu0 0.0
    %231 = vmatpush2.xpose.msra.mxu0 0.0
    %232 = vmatprep.subr.mxu0 0.0
    %233 = vmatpush2.xpose.msra.mxu0 0.0
    %234 = vmatprep.subr.mxu0 0.0
    %235 = vmatpush2.xpose.msra.mxu0 0.0
    %236 = vmatprep.mubr.f32.mxu0 0.0
    %237 = vmatmul.mubr.f32.gmra.mxu0 %v156
    %v238 = vpop.f32.mrf.mxu0
    %v239 = vadd.f32 0.0, %v238
    %v240 = vpop.f32.mrf.mxu0
    %241 = vmatprep.mubr.f32.mxu0 0.0
    %242 = vmatmul.mubr.f32.gmra.mxu0 %v158
    %v243 = vpop.f32.mrf.mxu0
    %v244 = vadd.f32 0.0, %v243
    %v245 = vpop.f32.mrf.mxu0
    %246 = vmatprep.mubr.f32.mxu0 0.0
    %247 = vmatmul.mubr.f32.gmra.mxu0 %v160
    %v248 = vpop.f32.mrf.mxu0
    %v249 = vadd.f32 0.0, %v248
    %v250 = vpop.f32.mrf.mxu0
    %251 = vmatprep.mubr.f32.mxu0 0.0
    %252 = vmatmul.mubr.f32.gmra.mxu0 %v162
    %v253 = vpop.f32.mrf.mxu0
    %v254 = vadd.f32 0.0, %v253
    %v255 = vpop.f32.mrf.mxu0
    %256 = vdwg.mxu0
    %v257 = vlaneseq
    %v258 = vshrl.u32 %v257, 7
    %v259 = vadd.s32 %v258, 8
    %v260 = vadd.s32 %v258, 16
    %v261 = vadd.s32 %v258, 24
    %v262 = vlaneseq
    %v263 = vand.u32 %v262, 127
    %v264 = vshra.s32 %v258, 4
    %v265 = vshra.s32 %v259, 4
    %v266 = vshra.s32 %v260, 4
    %v267 = vshra.s32 %v261, 4
    %v268 = vshra.s32 %v263, 4
    %vm269 = vcmp.eq.s32.totalorder %v264, %v268
    %vm270 = vcmp.eq.s32.totalorder %v265, %v268
    %vm271 = vcmp.eq.s32.totalorder %v266, %v268
    %vm272 = vcmp.eq.s32.totalorder %v267, %v268
    %v273 = vand.u32 %v263, 15
    %v274 = vand.u32 %v258, 15
    %v275 = vand.u32 %v259, 15
    %v276 = vand.u32 %v260, 15
    %v277 = vand.u32 %v261, 15
    %vm278 = vcmp.le.s32.totalorder %v273, %v274
    %vm279 = vcmp.le.s32.totalorder %v273, %v275
    %vm280 = vcmp.le.s32.totalorder %v273, %v276
    %vm281 = vcmp.le.s32.totalorder %v273, %v277
    %vm282 = vmand %vm269, %vm278
    %vm283 = vmand %vm270, %vm279
    %vm284 = vmand %vm271, %vm280
    %vm285 = vmand %vm272, %vm281
    %v286 = vsel %vm282, %v239, -1e+30
    %v287 = vsel %vm283, %v244, -1e+30
    %v288 = vsel %vm284, %v249, -1e+30
    %v289 = vsel %vm285, %v254, -1e+30
    %vm290 = vcmask 261120
    %v291 = vsel %vm290, %v286, -inf
    %292 = vmax.xlane.f32.xlu0 %v291
    %v293 = vpop.xlane.xlu0 %292
    %v294 = vsel %vm290, %v287, -inf
    %295 = vmax.xlane.f32.xlu0 %v294
    %v296 = vpop.xlane.xlu0 %295
    %v297 = vsel %vm290, %v288, -inf
    %298 = vmax.xlane.f32.xlu0 %v297
    %v299 = vpop.xlane.xlu0 %298
    %v300 = vsel %vm290, %v289, -inf
    %301 = vmax.xlane.f32.xlu0 %v300
    %v302 = vpop.xlane.xlu0 %301
    %v303 = vsub.f32 %v286, %v293
    %v304 = vsub.f32 %v287, %v296
    %v305 = vsub.f32 %v288, %v299
    %v306 = vsub.f32 %v289, %v302
    %v307 = vmul.f32 %v303, 1.442695
    %v308 = vpow.pop %v307
    %v309 = vmul.f32 %v304, 1.442695
    %v310 = vpow.pop %v309
    %v311 = vmul.f32 %v305, 1.442695
    %v312 = vpow.pop %v311
    %v313 = vmul.f32 %v306, 1.442695
    %v314 = vpow.pop %v313
    %v315 = vsel %vm290, %v308, 0.0
    %316 = vadd.xlane.f32.xlu0 %v315
    %v317 = vpop.xlane.xlu0 %316
    %v318 = vsel %vm290, %v310, 0.0
    %319 = vadd.xlane.f32.xlu0 %v318
    %v320 = vpop.xlane.xlu0 %319
    %v321 = vsel %vm290, %v312, 0.0
    %322 = vadd.xlane.f32.xlu0 %v321
    %v323 = vpop.xlane.xlu0 %322
    %v324 = vsel %vm290, %v314, 0.0
    %325 = vadd.xlane.f32.xlu0 %v324
    %v326 = vpop.xlane.xlu0 %325
    %v327 = vrcp.pop %v317
    %v328 = vrcp.pop %v320
    %v329 = vrcp.pop %v323
    %v330 = vrcp.pop %v326
    %v331 = vmul.f32 %v308, %v327
    %v332 = vmul.f32 %v310, %v328
    %v333 = vmul.f32 %v312, %v329
    %v334 = vmul.f32 %v314, %v330
    %335 = vrot.lane.b32.xlu0 %v125, 112
    %v336 = vpop.permute.xlu0 %335
    %337 = vrot.lane.b32.xlu0 %v130, 112
    %v338 = vpop.permute.xlu0 %337
    %339 = vrot.lane.b32.xlu0 %v135, 112
    %v340 = vpop.permute.xlu0 %339
    %341 = vrot.lane.b32.xlu0 %v140, 112
    %v342 = vpop.permute.xlu0 %341
    %v348 = vsel %vm290, %v331, 0
    %v351 = vsel %vm290, %v332, 0
    %v354 = vsel %vm290, %v333, 0
    %v357 = vsel %vm290, %v334, 0
    %359 = vmatprep.subr.mxu0 0.0
    %360 = vmatpush1.msra.mxu0 0.0
    %361 = vmatprep.subr.mxu0 0.0
    %362 = vmatpush1.msra.mxu0 0.0
    %363 = vmatprep.subr.mxu0 0.0
    %364 = vmatpush1.msra.mxu0 0.0
    %365 = vmatprep.subr.mxu0 0.0
    %366 = vmatpush1.msra.mxu0 0.0
    %367 = vmatprep.subr.mxu0 0.0
    %368 = vmatpush1.msra.mxu0 0.0
    %369 = vmatprep.subr.mxu0 0.0
    %370 = vmatpush1.msra.mxu0 0.0
    %371 = vmatprep.subr.mxu0 0.0
    %372 = vmatpush1.msra.mxu0 0.0
    %373 = vmatprep.subr.mxu0 0.0
    %374 = vmatpush1.msra.mxu0 0.0
    %375 = vmatprep.subr.mxu0 0.0
    %376 = vmatpush1.msra.mxu0 0.0
    %377 = vmatprep.subr.mxu0 0.0
    %378 = vmatpush1.msra.mxu0 0.0
    %379 = vmatprep.subr.mxu0 0.0
    %380 = vmatpush1.msra.mxu0 0.0
    %381 = vmatprep.subr.mxu0 0.0
    %382 = vmatpush1.msra.mxu0 0.0
    %383 = vmatprep.subr.mxu0 0.0
    %384 = vmatpush1.msra.mxu0 %v342
    %385 = vmatprep.subr.mxu0 0.0
    %386 = vmatpush1.msra.mxu0 %v340
    %387 = vmatprep.subr.mxu0 0.0
    %388 = vmatpush1.msra.mxu0 %v338
    %389 = vmatprep.subr.mxu0 0.0
    %390 = vmatpush1.msra.mxu0 %v336
    %391 = vmatprep.subr.mxu0 0.0
    %392 = vmatpush2.msra.mxu0 0.0
    %393 = vmatprep.subr.mxu0 0.0
    %394 = vmatpush2.msra.mxu0 0.0
    %395 = vmatprep.subr.mxu0 0.0
    %396 = vmatpush2.msra.mxu0 0.0
    %397 = vmatprep.subr.mxu0 0.0
    %398 = vmatpush2.msra.mxu0 0.0
    %399 = vmatprep.subr.mxu0 0.0
    %400 = vmatpush2.msra.mxu0 0.0
    %401 = vmatprep.subr.mxu0 0.0
    %402 = vmatpush2.msra.mxu0 0.0
    %403 = vmatprep.subr.mxu0 0.0
    %404 = vmatpush2.msra.mxu0 0.0
    %405 = vmatprep.subr.mxu0 0.0
    %406 = vmatpush2.msra.mxu0 0.0
    %407 = vmatprep.subr.mxu0 0.0
    %408 = vmatpush2.msra.mxu0 0.0
    %409 = vmatprep.subr.mxu0 0.0
    %410 = vmatpush2.msra.mxu0 0.0
    %411 = vmatprep.subr.mxu0 0.0
    %412 = vmatpush2.msra.mxu0 0.0
    %413 = vmatprep.subr.mxu0 0.0
    %414 = vmatpush2.msra.mxu0 0.0
    %415 = vmatprep.subr.mxu0 0.0
    %416 = vmatpush2.msra.mxu0 0.0
    %417 = vmatprep.subr.mxu0 0.0
    %418 = vmatpush2.msra.mxu0 0.0
    %419 = vmatprep.subr.mxu0 0.0
    %420 = vmatpush2.msra.mxu0 0.0
    %421 = vmatprep.subr.mxu0 0.0
    %422 = vmatpush2.msra.mxu0 0.0
    %423 = vmatprep.mubr.f32.mxu0 0.0
    %424 = vmatmul.mubr.f32.gmra.mxu0 %v348
    %v425 = vpop.f32.mrf.mxu0
    %v426 = vadd.f32 0.0, %v425
    %v427 = vpop.f32.mrf.mxu0
    %428 = vmatprep.mubr.f32.mxu0 0.0
    %429 = vmatmul.mubr.f32.gmra.mxu0 %v351
    %v430 = vpop.f32.mrf.mxu0
    %v431 = vadd.f32 0.0, %v430
    %v432 = vpop.f32.mrf.mxu0
    %433 = vmatprep.mubr.f32.mxu0 0.0
    %434 = vmatmul.mubr.f32.gmra.mxu0 %v354
    %v435 = vpop.f32.mrf.mxu0
    %v436 = vadd.f32 0.0, %v435
    %v437 = vpop.f32.mrf.mxu0
    %438 = vmatprep.mubr.f32.mxu0 0.0
    %439 = vmatmul.mubr.f32.gmra.mxu0 %v357
    %v440 = vpop.f32.mrf.mxu0
    %v441 = vadd.f32 0.0, %v440
    %v442 = vpop.f32.mrf.mxu0
    %443 = vdwg.mxu0
    %444 = vst.msk [vmem:[%s2] sm:$0xff] %vm155, %v426
    %445 = vst.msk [vmem:[%s2 + $0x8] sm:$0xff] %vm155, %v431
    %446 = vst.msk [vmem:[%s2 + $0x10] sm:$0xff] %vm155, %v436
    %447 = vst.msk [vmem:[%s2 + $0x18] sm:$0xff] %vm155, %v441
    // Predicated region
    $region18: #{head_forward.1} parent=1 // pred_check
      _
    $region19: #{head_forward.1} parent=1 // pred_check_branch
      %449 = sbr.rel (0) target = $region21
    $region20: #{head_forward.1} parent=1 // pred_region
      _
    $region21: #{head_forward.1} parent=1 // pred_fallthru
      _
    // Predicated region
    $region22: #{head_forward.1} parent=1 // pred_check
      _
    $region23: #{head_forward.1} parent=1 // pred_check_branch
      %451 = sbr.rel (0) target = $region25
    $region24: #{head_forward.1} parent=1 // pred_region
      _
    $region25: #{head_forward.1} parent=1 // pred_fallthru
      _
    %452 = vsyncpa [#allocation3], 1
    %453 = vsyncpa [#allocation5], 1

</llo_original>
